<compile_context>
chip_gen: v5e
topology: v5e:2x2
jax: 0.10.0
libtpu: 0.0.40
codegen_flags: <defaults>
</compile_context>

<pallas_src>
import functools

import jax
import jax.numpy as jnp
from jax import lax
from jax.experimental import pallas as pl
from jax.experimental.pallas import tpu as pltpu

EPS = 1e-6


def _layernorm(v, gamma, beta, h):
    """BERT-pytorch style LayerNorm: unbiased std, eps added outside the sqrt."""
    mean = jnp.mean(v, axis=-1, keepdims=True)
    diff = v - mean
    var = jnp.sum(diff * diff, axis=-1, keepdims=True) * (1.0 / (h - 1))
    std = jnp.sqrt(var)
    return gamma * diff / (std + EPS) + beta   # exact divide (hides under MXU/DMA slack)


def transformer_block_kernel(x_ref, p_ref, w_ref, b_ref, ln_ref,
                             o_ref, *, seq, hidden):
    rows = x_ref.shape[0]            # = Bt * seq (whole sequences stacked on rows)
    x = x_ref[...]                   # (rows, H) f32
    p = p_ref[...]

    g1 = ln_ref[0:1, :]
    b1 = ln_ref[1:2, :]
    g2 = ln_ref[2:3, :]
    b2 = ln_ref[3:4, :]

    # --- SublayerConnection's LayerNorm ----------------------------------
    xn = _layernorm(x, g1, b1, hidden)

    # --- GCNN: gated conv1d, kernel=3, same padding -----------------------
    h = xn + p

    # Taps h[s-1], h[s+1]: roll along rows (positive shifts only) and zero the
    # rows at sequence boundaries.  Each block holds whole sequences, so masking
    # rows with in-sequence position 0 / seq-1 also kills cross-sequence leakage
    # from the roll.  Each tap is cast to bf16 *before* the concat/dot so no
    # (rows, 3H) f32 intermediate is ever materialized.
    pos = lax.broadcasted_iota(jnp.int32, (rows, 1), 0) % seq
    h_prev = jnp.where(pos == 0, 0.0,
                       pltpu.roll(h, 1, axis=0)).astype(jnp.bfloat16)
    h_next = jnp.where(pos == seq - 1, 0.0,
                       pltpu.roll(h, rows - 1, axis=0)).astype(jnp.bfloat16)
    h_c = h.astype(jnp.bfloat16)

    if hidden >= 256:
        # Per-tap accumulating MXU dots against static slices of the weight
        # panel: no (rows, 3H) lhs buffer, short tap live ranges (VMEM/vreg win
        # on v7x's 64 MiB VMEM).  FLOPs identical to the fused form.
        ag = jnp.dot(h_prev, w_ref[pl.ds(0, hidden), :],
                     preferred_element_type=jnp.float32)
        ag += jnp.dot(h_c, w_ref[pl.ds(hidden, hidden), :],
                      preferred_element_type=jnp.float32)
        ag += jnp.dot(h_next, w_ref[pl.ds(2 * hidden, hidden), :],
                      preferred_element_type=jnp.float32)
        ag += b_ref[...]
    else:
        # Fused K=3H panel: better MXU fill when H is small (e.g. 128).
        lhs = jnp.concatenate([h_prev, h_c, h_next], axis=-1)       # bf16 (rows, 3H)
        ag = jnp.dot(lhs, w_ref[...],
                     preferred_element_type=jnp.float32) + b_ref[...]

    a = ag[:, :hidden]
    g = ag[:, hidden:]
    # sigmoid(g) == 0.5 * tanh(0.5 * g) + 0.5  -> keeps the transcendental on
    # the EUP slot and avoids the VALU divide of the logistic lowering.
    conv_out = a * (0.5 * jnp.tanh(0.5 * g) + 0.5)

    # --- residual (dropout == identity in eval) + final LayerNorm ---------
    y = x + conv_out
    o_ref[...] = _layernorm(y, g2, b2, hidden)


def _vmem_budget():
    """(scoped VMEM ceiling with headroom for Mosaic scratch, physical VMEM)."""
    phys = 128 << 20
    try:
        info = pltpu.get_tpu_info()
        phys = int(getattr(info, "vmem_capacity_bytes", phys)) or phys
    except Exception:  # interpret mode / unknown backend
        pass
    if phys <= (64 << 20):        # v7x-class: 64 MiB per TensorCore
        return 48 << 20, phys
    return 100 << 20, phys        # v5e / v6e: 128 MiB


def _pick_batch_tile(B, S, target_rows):
    """How many batch rows to fold into one block of the flattened (B*S, H) view.

    Constraints / preferences:
      * bt divides B
      * block rows (bt*S) must be a multiple of 8 unless the block covers the
        whole array (grid == 1)                       [(8,128) BlockSpec rule]
      * prefer rows <= target_rows, as large as possible (amortize the ~0.35 us
        per-step overhead)
      * prefer an even grid >= 2 (v7x: two TensorCores under "parallel")
    """
    legal = [bt for bt in range(1, B + 1)
             if B % bt == 0 and (bt == B or (bt * S) % 8 == 0)]
    if not legal:
        return B

    def key(bt):
        rows, steps = bt * S, B // bt
        fits = rows <= target_rows
        even = steps >= 2 and steps % 2 == 0
        third = -rows if fits else rows   # prefer large rows if fitting, else smallest
        return (not fits, not even, third)

    return min(legal, key=key)


def transformer_block(x, mask, inputP, params):
    """x, inputP: (B, S, H) float32. mask is unused (forwarded as None in PyTorch)."""
    del mask
    B, S, H = x.shape
    wa, ba, wb, bb, g1, b1, g2, b2 = params

    # Pack conv weights once in the wrapper:
    #   per tap k: [Wa[k] | Wb[k]] -> (H, 2H); stacked over taps on K -> (3H, 2H).
    w_fused = jnp.concatenate(
        [jnp.concatenate([wa[k], wb[k]], axis=1) for k in range(3)], axis=0
    ).astype(jnp.bfloat16)                                            # (3H, 2H) bf16
    bias = jnp.concatenate([ba, bb], axis=1).astype(jnp.float32)      # (1, 2H)
    ln_params = jnp.concatenate([g1, b1, g2, b2], axis=0).astype(jnp.float32)  # (4, H)

    vmem_ceiling, phys_vmem = _vmem_budget()

    # Generation-aware block-row target: bigger tiles on 128 MiB parts (mem-bound
    # roofline fraction climbs with tile size), tighter on 64 MiB v7x.
    target_rows = 512 if phys_vmem <= (64 << 20) else 1024
    w_resident = w_fused.size * 2 + bias.size * 4 + ln_params.size * 4   # 1-buffered
    per_row = (3 * 2 + 14) * H * 4     # x/p/out double-buffered + ~14H f32 temps/row
    rows_cap = max(8, int((vmem_ceiling // 2 - w_resident) // max(per_row, 1)))
    target_rows = max(8, min(target_rows, rows_cap))

    bt = _pick_batch_tile(B, S, target_rows)
    rows = bt * S
    grid = (B // bt,)

    # Flatten batch*seq so the kernel sees plain lane-dense 2D tiles.
    # NOTE: H should be a multiple of 128 for full lane utilization in
    # production; any H is functionally legal because the lane dim of every
    # block equals the full array's lane dim.
    x2 = x.reshape(B * S, H)
    p2 = inputP.reshape(B * S, H)

    kernel = functools.partial(transformer_block_kernel, seq=S, hidden=H)

    rows_spec = pl.BlockSpec((rows, H), lambda i: (i, 0))

    def const(shape):
        # Grid-invariant operand: single pipeline buffer, DMA'd once.
        return pl.BlockSpec(shape, lambda i: (0,) * len(shape),
                            pipeline_mode=pl.Buffered(1))

    # Scoped VMEM: resident (1-buffered) weights/params + double-buffered
    # activation tiles + in-kernel value temporaries, with margin, clamped to a
    # generation-aware ceiling (never the full physical VMEM).
    act_bytes = 3 * 2 * rows * H * 4          # x, p, out  (double-buffered f32)
    tmp_bytes = rows * 14 * H * 4             # xn, h, taps(bf16), ag, y, ... (estimate)
    need = w_resident + act_bytes + tmp_bytes + (4 << 20)
    vmem_limit = int(min(max(need, 16 << 20), vmem_ceiling))

    out2 = pl.pallas_call(
        kernel,
        out_shape=jax.ShapeDtypeStruct((B * S, H), jnp.float32),
        grid_spec=pltpu.PrefetchScalarGridSpec(
            num_scalar_prefetch=0,
            grid=grid,
            in_specs=[
                rows_spec,                 # x        (rows, H)
                rows_spec,                 # inputP   (rows, H)
                const((3 * H, 2 * H)),     # fused conv weights [Wa|Wb], bf16
                const((1, 2 * H)),         # fused conv bias [ba|bb]
                const((4, H)),             # packed LN params [g1; b1; g2; b2]
            ],
            out_specs=rows_spec,
        ),
        compiler_params=pltpu.CompilerParams(
            dimension_semantics=("parallel",),
            vmem_limit_bytes=vmem_limit,
        ),
    )(x2, p2, w_fused, bias, ln_params)

    return out2.reshape(B, S, H)


def reference(x, inputP, params):
    """Pure-JAX reference of the same forward pass (matmuls in bf16 like the kernel)."""
    wa, ba, wb, bb, g1, b1, g2, b2 = params
    B, S, H = x.shape

    def ln(v, g, b):
        mean = v.mean(-1, keepdims=True)
        var = ((v - mean) ** 2).sum(-1, keepdims=True) / (H - 1)
        return g * (v - mean) / (jnp.sqrt(var) + EPS) + b

    xn = ln(x, g1[0], b1[0])
    h = xn + inputP
    hpad = jnp.pad(h, ((0, 0), (1, 1), (0, 0)))
    tap = lambda k: hpad[:, k:k + S].astype(jnp.bfloat16)
    a = ba[0] + sum(jnp.einsum("bsh,hg->bsg", tap(k), wa[k].astype(jnp.bfloat16),
                               preferred_element_type=jnp.float32) for k in range(3))
    g = bb[0] + sum(jnp.einsum("bsh,hg->bsg", tap(k), wb[k].astype(jnp.bfloat16),
                               preferred_element_type=jnp.float32) for k in range(3))
    y = x + a * jax.nn.sigmoid(g)
    return ln(y, g2[0], b2[0])


if __name__ == "__main__":
    B, S, H = 2, 16, 32  # small demo; production H should be a multiple of 128

    key = jax.random.PRNGKey(0)
    ks = jax.random.split(key, 6)
    x = jax.random.normal(ks[0], (B, S, H), jnp.float32)
    inputP = jax.random.normal(ks[1], (B, S, H), jnp.float32)
    mask = None  # unused by the forward pass

    scale = 1.0 / jnp.sqrt(3.0 * H)
    wa = jax.random.normal(ks[2], (3, H, H), jnp.float32) * scale
    wb = jax.random.normal(ks[3], (3, H, H), jnp.float32) * scale
    ba = jax.random.normal(ks[4], (1, H), jnp.float32) * 0.1
    bb = jax.random.normal(ks[5], (1, H), jnp.float32) * 0.1
    g1 = jnp.ones((1, H), jnp.float32)
    b1 = jnp.zeros((1, H), jnp.float32)
    g2 = jnp.ones((1, H), jnp.float32)
    b2 = jnp.zeros((1, H), jnp.float32)
    params = (wa, ba, wb, bb, g1, b1, g2, b2)

    out = transformer_block(x, mask, inputP, params)
    out = jax.block_until_ready(out)

    ref = reference(x, inputP, params)
    assert out.shape == (B, S, H)
    max_err = float(jnp.max(jnp.abs(out - ref)))
    assert jnp.allclose(out, ref, atol=2e-3, rtol=2e-3), f"Pallas mismatch, max_err={max_err}"

    print("KERNEL_OK")
</pallas_src>

<mosaic_0001>
module attributes {stable_mosaic.version = 11 : i64} {
  func.func @transformer_block_kernel(%arg0: i32, %arg1: memref<16x32xf32, #tpu.memory_space<vmem>>, %arg2: memref<16x32xf32, #tpu.memory_space<vmem>>, %arg3: memref<96x64xbf16, #tpu.memory_space<vmem>>, %arg4: memref<1x64xf32, #tpu.memory_space<vmem>>, %arg5: memref<4x32xf32, #tpu.memory_space<vmem>>, %arg6: memref<16x32xf32, #tpu.memory_space<vmem>>) attributes {dimension_semantics = [#tpu.dimension_semantics<parallel>], iteration_bounds = array<i64: 2>, scalar_prefetch = 0 : i64, scratch_operands = 0 : i64, tpu.core_type = #tpu.core_type<tc>, window_params = [{transform_indices = @transform_0, window_bounds = array<i64: 16, 32>}, {transform_indices = @transform_1, window_bounds = array<i64: 16, 32>}, {pipeline_mode = #tpu.pipeline_mode<synchronous>, transform_indices = @transform_2, window_bounds = array<i64: 96, 64>}, {pipeline_mode = #tpu.pipeline_mode<synchronous>, transform_indices = @transform_3, window_bounds = array<i64: 1, 64>}, {pipeline_mode = #tpu.pipeline_mode<synchronous>, transform_indices = @transform_4, window_bounds = array<i64: 4, 32>}, {transform_indices = @transform_5, window_bounds = array<i64: 16, 32>}]} {
    %c0 = arith.constant 0 : index
    %c0_0 = arith.constant 0 : index
    %0 = vector.load %arg1[%c0, %c0_0] : memref<16x32xf32, #tpu.memory_space<vmem>>, vector<16x32xf32>
    %c0_1 = arith.constant 0 : index
    %c0_2 = arith.constant 0 : index
    %1 = vector.load %arg2[%c0_1, %c0_2] : memref<16x32xf32, #tpu.memory_space<vmem>>, vector<16x32xf32>
    %c0_3 = arith.constant 0 : index
    %c0_4 = arith.constant 0 : index
    %2 = vector.load %arg5[%c0_3, %c0_4] : memref<4x32xf32, #tpu.memory_space<vmem>>, vector<1x32xf32>
    %c1 = arith.constant 1 : index
    %c0_5 = arith.constant 0 : index
    %3 = vector.load %arg5[%c1, %c0_5] : memref<4x32xf32, #tpu.memory_space<vmem>>, vector<1x32xf32>
    %c2 = arith.constant 2 : index
    %c0_6 = arith.constant 0 : index
    %4 = vector.load %arg5[%c2, %c0_6] : memref<4x32xf32, #tpu.memory_space<vmem>>, vector<1x32xf32>
    %c3 = arith.constant 3 : index
    %c0_7 = arith.constant 0 : index
    %5 = vector.load %arg5[%c3, %c0_7] : memref<4x32xf32, #tpu.memory_space<vmem>>, vector<1x32xf32>
    %cst = arith.constant dense<0.000000e+00> : vector<16xf32>
    %6 = vector.multi_reduction <add>, %0, %cst [1] : vector<16x32xf32> to vector<16xf32>
    %7 = vector.shape_cast %6 : vector<16xf32> to vector<16x1xf32>
    %cst_8 = arith.constant 3.200000e+01 : f32
    %8 = vector.broadcast %cst_8 : f32 to vector<16x1xf32>
    %9 = arith.divf %7, %8 : vector<16x1xf32>
    %10 = vector.broadcast %9 : vector<16x1xf32> to vector<16x32xf32>
    %11 = arith.subf %0, %10 : vector<16x32xf32>
    %12 = arith.mulf %11, %11 : vector<16x32xf32>
    %cst_9 = arith.constant dense<0.000000e+00> : vector<16xf32>
    %13 = vector.multi_reduction <add>, %12, %cst_9 [1] : vector<16x32xf32> to vector<16xf32>
    %14 = vector.shape_cast %13 : vector<16xf32> to vector<16x1xf32>
    %cst_10 = arith.constant 0.0322580636 : f32
    %15 = vector.broadcast %cst_10 : f32 to vector<16x1xf32>
    %16 = arith.mulf %14, %15 : vector<16x1xf32>
    %17 = math.sqrt %16 : vector<16x1xf32>
    %18 = vector.broadcast %2 : vector<1x32xf32> to vector<16x32xf32>
    %19 = arith.mulf %18, %11 : vector<16x32xf32>
    %cst_11 = arith.constant 9.99999997E-7 : f32
    %20 = vector.broadcast %cst_11 : f32 to vector<16x1xf32>
    %21 = arith.addf %17, %20 : vector<16x1xf32>
    %22 = vector.broadcast %21 : vector<16x1xf32> to vector<16x32xf32>
    %23 = arith.divf %19, %22 : vector<16x32xf32>
    %24 = vector.broadcast %3 : vector<1x32xf32> to vector<16x32xf32>
    %25 = arith.addf %23, %24 : vector<16x32xf32>
    %26 = arith.addf %25, %1 : vector<16x32xf32>
    %27 = tpu.iota {dimensions = array<i32: 0>} : vector<16x1xi32>
    %c16_i32 = arith.constant 16 : i32
    %c0_i32 = arith.constant 0 : i32
    %28 = arith.cmpi eq, %c16_i32, %c0_i32 : i32
    %c1_i32 = arith.constant 1 : i32
    %29 = arith.select %28, %c1_i32, %c16_i32 : i32
    %30 = vector.broadcast %29 : i32 to vector<16x1xi32>
    %31 = arith.remsi %27, %30 : vector<16x1xi32>
    %c0_i32_12 = arith.constant 0 : i32
    %32 = vector.broadcast %c0_i32_12 : i32 to vector<16x1xi32>
    %33 = arith.cmpi ne, %31, %32 : vector<16x1xi32>
    %c0_i32_13 = arith.constant 0 : i32
    %34 = vector.broadcast %c0_i32_13 : i32 to vector<16x1xi32>
    %35 = arith.cmpi slt, %31, %34 : vector<16x1xi32>
    %c0_i32_14 = arith.constant 0 : i32
    %36 = arith.cmpi slt, %29, %c0_i32_14 : i32
    %37 = vector.broadcast %36 : i1 to vector<16x1xi1>
    %38 = vector.broadcast %37 : vector<16x1xi1> to vector<16x1xi1>
    %39 = arith.xori %35, %38 : vector<16x1xi1>
    %40 = arith.andi %39, %33 : vector<16x1xi1>
    %41 = vector.broadcast %29 : i32 to vector<16x1xi32>
    %42 = arith.addi %31, %41 : vector<16x1xi32>
    %43 = arith.select %40, %42, %31 : vector<16x1xi1>, vector<16x1xi32>
    %c0_i32_15 = arith.constant 0 : i32
    %44 = vector.broadcast %c0_i32_15 : i32 to vector<16x1xi32>
    %45 = arith.cmpi eq, %43, %44 : vector<16x1xi32>
    %c1_i32_16 = arith.constant 1 : i32
    %46 = tpu.dynamic_rotate %26 by %c1_i32_16 dim 0 : vector<16x32xf32>, i32 -> vector<16x32xf32>
    %cst_17 = arith.constant 0.000000e+00 : f32
    %47 = vector.shape_cast %45 : vector<16x1xi1> to vector<16x1xi1>
    %48 = vector.broadcast %47 : vector<16x1xi1> to vector<16x32xi1>
    %49 = vector.broadcast %cst_17 : f32 to vector<16x32xf32>
    %50 = arith.select %48, %49, %46 : vector<16x32xi1>, vector<16x32xf32>
    %51 = arith.truncf %50 : vector<16x32xf32> to vector<16x32xbf16>
    %c15_i32 = arith.constant 15 : i32
    %52 = vector.broadcast %c15_i32 : i32 to vector<16x1xi32>
    %53 = arith.cmpi eq, %43, %52 : vector<16x1xi32>
    %c15_i32_18 = arith.constant 15 : i32
    %54 = tpu.dynamic_rotate %26 by %c15_i32_18 dim 0 : vector<16x32xf32>, i32 -> vector<16x32xf32>
    %cst_19 = arith.constant 0.000000e+00 : f32
    %55 = vector.shape_cast %53 : vector<16x1xi1> to vector<16x1xi1>
    %56 = vector.broadcast %55 : vector<16x1xi1> to vector<16x32xi1>
    %57 = vector.broadcast %cst_19 : f32 to vector<16x32xf32>
    %58 = arith.select %56, %57, %54 : vector<16x32xi1>, vector<16x32xf32>
    %59 = arith.truncf %58 : vector<16x32xf32> to vector<16x32xbf16>
    %60 = arith.truncf %26 : vector<16x32xf32> to vector<16x32xbf16>
    %61 = tpu.concatenate %51, %60, %59 in 1 : vector<16x32xbf16>, vector<16x32xbf16>, vector<16x32xbf16> -> vector<16x96xbf16>
    %c0_20 = arith.constant 0 : index
    %c0_21 = arith.constant 0 : index
    %62 = vector.load %arg3[%c0_20, %c0_21] : memref<96x64xbf16, #tpu.memory_space<vmem>>, vector<96x64xbf16>
    %cst_22 = arith.constant dense<0.000000e+00> : vector<16x64xf32>
    %63 = tpu.matmul %61, %62, %cst_22 {dimension_numbers = #tpu.dot_dimension_numbers<[1], [0], [0], [1], [0, 0, 1, 1], [], []>} : vector<16x96xbf16>, vector<96x64xbf16>, vector<16x64xf32> -> vector<16x64xf32>
    %c0_23 = arith.constant 0 : index
    %c0_24 = arith.constant 0 : index
    %64 = vector.load %arg4[%c0_23, %c0_24] : memref<1x64xf32, #tpu.memory_space<vmem>>, vector<1x64xf32>
    %65 = vector.broadcast %64 : vector<1x64xf32> to vector<16x64xf32>
    %66 = arith.addf %63, %65 : vector<16x64xf32>
    %67 = vector.extract_strided_slice %66 {offsets = [0, 0], sizes = [16, 32], strides = [1, 1]} : vector<16x64xf32> to vector<16x32xf32>
    %68 = vector.extract_strided_slice %66 {offsets = [0, 32], sizes = [16, 32], strides = [1, 1]} : vector<16x64xf32> to vector<16x32xf32>
    %cst_25 = arith.constant 5.000000e-01 : f32
    %69 = vector.broadcast %cst_25 : f32 to vector<16x32xf32>
    %70 = arith.mulf %69, %68 : vector<16x32xf32>
    %71 = math.tanh %70 : vector<16x32xf32>
    %cst_26 = arith.constant 5.000000e-01 : f32
    %72 = vector.broadcast %cst_26 : f32 to vector<16x32xf32>
    %73 = arith.mulf %72, %71 : vector<16x32xf32>
    %cst_27 = arith.constant 5.000000e-01 : f32
    %74 = vector.broadcast %cst_27 : f32 to vector<16x32xf32>
    %75 = arith.addf %73, %74 : vector<16x32xf32>
    %76 = arith.mulf %67, %75 : vector<16x32xf32>
    %77 = arith.addf %0, %76 : vector<16x32xf32>
    %cst_28 = arith.constant dense<0.000000e+00> : vector<16xf32>
    %78 = vector.multi_reduction <add>, %77, %cst_28 [1] : vector<16x32xf32> to vector<16xf32>
    %79 = vector.shape_cast %78 : vector<16xf32> to vector<16x1xf32>
    %cst_29 = arith.constant 3.200000e+01 : f32
    %80 = vector.broadcast %cst_29 : f32 to vector<16x1xf32>
    %81 = arith.divf %79, %80 : vector<16x1xf32>
    %82 = vector.broadcast %81 : vector<16x1xf32> to vector<16x32xf32>
    %83 = arith.subf %77, %82 : vector<16x32xf32>
    %84 = arith.mulf %83, %83 : vector<16x32xf32>
    %cst_30 = arith.constant dense<0.000000e+00> : vector<16xf32>
    %85 = vector.multi_reduction <add>, %84, %cst_30 [1] : vector<16x32xf32> to vector<16xf32>
    %86 = vector.shape_cast %85 : vector<16xf32> to vector<16x1xf32>
    %cst_31 = arith.constant 0.0322580636 : f32
    %87 = vector.broadcast %cst_31 : f32 to vector<16x1xf32>
    %88 = arith.mulf %86, %87 : vector<16x1xf32>
    %89 = math.sqrt %88 : vector<16x1xf32>
    %90 = vector.broadcast %4 : vector<1x32xf32> to vector<16x32xf32>
    %91 = arith.mulf %90, %83 : vector<16x32xf32>
    %cst_32 = arith.constant 9.99999997E-7 : f32
    %92 = vector.broadcast %cst_32 : f32 to vector<16x1xf32>
    %93 = arith.addf %89, %92 : vector<16x1xf32>
    %94 = vector.broadcast %93 : vector<16x1xf32> to vector<16x32xf32>
    %95 = arith.divf %91, %94 : vector<16x32xf32>
    %96 = vector.broadcast %5 : vector<1x32xf32> to vector<16x32xf32>
    %97 = arith.addf %95, %96 : vector<16x32xf32>
    %c0_33 = arith.constant 0 : index
    %c0_34 = arith.constant 0 : index
    %98 = vector.load %arg6[%c0_33, %c0_34] : memref<16x32xf32, #tpu.memory_space<vmem>>, vector<16x32xf32>
    tpu.vector_store %arg6[%c0_33, %c0_34], %97 {strides = array<i32>} : memref<16x32xf32, #tpu.memory_space<vmem>>, vector<16x32xf32>,
    return
  }
  func.func @transform_0(%arg0: i32) -> (i32, i32) {
    %c0_i32 = arith.constant 0 : i32
    %c0_i32_0 = arith.constant 0 : i32
    return %arg0, %c0_i32 : i32, i32
  }
  func.func @transform_1(%arg0: i32) -> (i32, i32) {
    %c0_i32 = arith.constant 0 : i32
    %c0_i32_0 = arith.constant 0 : i32
    return %arg0, %c0_i32 : i32, i32
  }
  func.func @transform_2(%arg0: i32) -> (i32, i32) {
    %c0_i32 = arith.constant 0 : i32
    %c0_i32_0 = arith.constant 0 : i32
    %c0_i32_1 = arith.constant 0 : i32
    return %c0_i32, %c0_i32_0 : i32, i32
  }
  func.func @transform_3(%arg0: i32) -> (i32, i32) {
    %c0_i32 = arith.constant 0 : i32
    %c0_i32_0 = arith.constant 0 : i32
    %c0_i32_1 = arith.constant 0 : i32
    return %c0_i32, %c0_i32_0 : i32, i32
  }
  func.func @transform_4(%arg0: i32) -> (i32, i32) {
    %c0_i32 = arith.constant 0 : i32
    %c0_i32_0 = arith.constant 0 : i32
    %c0_i32_1 = arith.constant 0 : i32
    return %c0_i32, %c0_i32_0 : i32, i32
  }
  func.func @transform_5(%arg0: i32) -> (i32, i32) {
    %c0_i32 = arith.constant 0 : i32
    %c0_i32_0 = arith.constant 0 : i32
    return %arg0, %c0_i32 : i32, i32
  }
}

</mosaic_0001>

<llo_original>
// kernel: tpu_custom_call.1
$region0: #{tpu_custom_call.1}
  #allocation0 [shape = 'u32[]', space=smem, size = 0x4, offset = 0x4, fixed_abs, tag = 'smem constant byte address 0x4 - core index']
  #allocation1 [shape = 'u32[72,128]{1,0:T(1,128)}', space=vmem, size = 0x9000, scoped, tag = 'internal scratch']
  %s0 = inlined_call_operand.vmem [shape: f32[32,32], index: 0, kind: input, shape index: {}]
  %s1 = inlined_call_operand.vmem [shape: f32[32,32], index: 1, kind: input, shape index: {}]
  %s2 = inlined_call_operand.vmem [shape: bf16[96,64], index: 2, kind: input, shape index: {}]
  %s3 = inlined_call_operand.vmem [shape: f32[1,64], index: 3, kind: input, shape index: {}]
  %s4 = inlined_call_operand.vmem [shape: f32[4,32], index: 4, kind: input, shape index: {}]
  %s5 = inlined_call_operand.hbm [shape: f32[32,32], index: 5, kind: output, shape index: {}]
  %s6 = sld [smem:[#allocation0]]
  $region53: #{tpu_custom_call.1} parent=0
    _
  %s8 = ssub.s32 1, %s6
  %s9 = scalar_select 0, %s8, %s6
  $region1: #{tpu_custom_call.1} parent=0
    #allocation2 [shape = 'u8[16384]{0}', space=vmem, size = 0x4000, scoped, tag = 'output window, operand 0']
    #allocation3 [shape = 's32[2]{0}', space=sflag, size = 0x8, scoped, tag = 'scoped memory for tpu_custom_call.1']
    %10 = vsyncpa [#allocation3], 0
    %s11 = scalar_lea.sflag [#allocation3], 1
    %12 = vsyncpa %s11, 0
    loop: start=0, step=1, limit=4
    $region2: #{tpu_custom_call.1} parent=1 // loop_pre_header
      _
    $region3: #{tpu_custom_call.1} parent=1 // loop_header
      %s14 = sphi 0, %s18
      %p15 = scmp.ge.s32.totalorder %s14, 4
      %s24 = sphi 0, %s26
      %s27 = sphi 0, %s24
      %s28 = sphi 0, %s27
      %s44 = sphi 0, %s28
      %s50 = sphi 0, %s52
      %s53 = sphi 0, %s50
      %s54 = sphi 0, %s53
      %s70 = sphi 0, %s54
      %s74 = sphi 0, %s74
      %s76 = sphi 0, %s74
      %s77 = sphi 0, %s76
      %s91 = sphi 0, %s77
      %s95 = sphi 0, %s95
      %s97 = sphi 0, %s95
      %s98 = sphi 0, %s97
      %s112 = sphi 0, %s98
      %s116 = sphi 0, %s116
      %s118 = sphi 0, %s116
      %s119 = sphi 0, %s118
      %s133 = sphi 0, %s119
      %s139 = sphi 0, %s141
      %s142 = sphi 0, %s139
      %s143 = sphi 0, %s142
      %s159 = sphi 0, %s143
    $region4: #{tpu_custom_call.1} parent=1 // loop_header_branch
      %17 = sbr.rel (%p15) target = $region8
    $region5: #{tpu_custom_call.1} parent=1 // loop_body
      %s19 = ssub.s32 %s14, 1
      %s20 = ssub.s32 %s14, 2
      %s21 = sadd.s32 %s14, 1
      %s22 = ssub.s32 %s14, %s21
      %p23 = scmp.eq.s32.totalorder %s22, 0
      %s25 = sadd.s32 %s24, 1
      %s26 = scalar_select %p23, %s24, %s25
      %p29 = pneg %p23
      %p30 = scmp.eq.s32.totalorder %s14, 1
      %p31 = por %p29, %p30
      %p32 = scmp.ne.s32.totalorder %s24, %s27
      %p33 = scmp.eq.s32.totalorder %s14, 0
      %p34 = por %p32, %p33
      %p35 = scmp.ne.s32.totalorder %s24, %s27
      %p36 = scmp.eq.s32.totalorder %s19, 1
      %p37 = por %p35, %p36
      %p38 = scmp.ne.s32.totalorder %s27, %s28
      %p39 = scmp.eq.s32.totalorder %s19, 0
      %p40 = por %p38, %p39
      %p41 = scmp.ne.s32.totalorder %s27, %s28
      %p42 = scmp.eq.s32.totalorder %s20, 1
      %p43 = por %p41, %p42
      %p45 = scmp.ne.s32.totalorder %s28, %s44
      %p46 = scmp.eq.s32.totalorder %s20, 0
      %p47 = por %p45, %p46
      %s48 = ssub.s32 %s14, %s21
      %p49 = scmp.eq.s32.totalorder %s48, 0
      %s51 = sadd.s32 %s50, 1
      %s52 = scalar_select %p49, %s50, %s51
      %p55 = pneg %p49
      %p56 = scmp.eq.s32.totalorder %s14, 1
      %p57 = por %p55, %p56
      %p58 = scmp.ne.s32.totalorder %s50, %s53
      %p59 = scmp.eq.s32.totalorder %s14, 0
      %p60 = por %p58, %p59
      %p61 = scmp.ne.s32.totalorder %s50, %s53
      %p62 = scmp.eq.s32.totalorder %s19, 1
      %p63 = por %p61, %p62
      %p64 = scmp.ne.s32.totalorder %s53, %s54
      %p65 = scmp.eq.s32.totalorder %s19, 0
      %p66 = por %p64, %p65
      %p67 = scmp.ne.s32.totalorder %s53, %s54
      %p68 = scmp.eq.s32.totalorder %s20, 1
      %p69 = por %p67, %p68
      %p71 = scmp.ne.s32.totalorder %s54, %s70
      %p72 = scmp.eq.s32.totalorder %s20, 0
      %p73 = por %p71, %p72
      %s75 = sadd.s32 %s74, 1
      %p78 = scmp.eq.s32.totalorder %s14, 1
      %p79 = scmp.ne.s32.totalorder %s74, %s76
      %p80 = scmp.eq.s32.totalorder %s14, 0
      %p81 = por %p79, %p80
      %p82 = scmp.ne.s32.totalorder %s74, %s76
      %p83 = scmp.eq.s32.totalorder %s19, 1
      %p84 = por %p82, %p83
      %p85 = scmp.ne.s32.totalorder %s76, %s77
      %p86 = scmp.eq.s32.totalorder %s19, 0
      %p87 = por %p85, %p86
      %p88 = scmp.ne.s32.totalorder %s76, %s77
      %p89 = scmp.eq.s32.totalorder %s20, 1
      %p90 = por %p88, %p89
      %p92 = scmp.ne.s32.totalorder %s77, %s91
      %p93 = scmp.eq.s32.totalorder %s20, 0
      %p94 = por %p92, %p93
      %s96 = sadd.s32 %s95, 1
      %p99 = scmp.eq.s32.totalorder %s14, 1
      %p100 = scmp.ne.s32.totalorder %s95, %s97
      %p101 = scmp.eq.s32.totalorder %s14, 0
      %p102 = por %p100, %p101
      %p103 = scmp.ne.s32.totalorder %s95, %s97
      %p104 = scmp.eq.s32.totalorder %s19, 1
      %p105 = por %p103, %p104
      %p106 = scmp.ne.s32.totalorder %s97, %s98
      %p107 = scmp.eq.s32.totalorder %s19, 0
      %p108 = por %p106, %p107
      %p109 = scmp.ne.s32.totalorder %s97, %s98
      %p110 = scmp.eq.s32.totalorder %s20, 1
      %p111 = por %p109, %p110
      %p113 = scmp.ne.s32.totalorder %s98, %s112
      %p114 = scmp.eq.s32.totalorder %s20, 0
      %p115 = por %p113, %p114
      %s117 = sadd.s32 %s116, 1
      %p120 = scmp.eq.s32.totalorder %s14, 1
      %p121 = scmp.ne.s32.totalorder %s116, %s118
      %p122 = scmp.eq.s32.totalorder %s14, 0
      %p123 = por %p121, %p122
      %p124 = scmp.ne.s32.totalorder %s116, %s118
      %p125 = scmp.eq.s32.totalorder %s19, 1
      %p126 = por %p124, %p125
      %p127 = scmp.ne.s32.totalorder %s118, %s119
      %p128 = scmp.eq.s32.totalorder %s19, 0
      %p129 = por %p127, %p128
      %p130 = scmp.ne.s32.totalorder %s118, %s119
      %p131 = scmp.eq.s32.totalorder %s20, 1
      %p132 = por %p130, %p131
      %p134 = scmp.ne.s32.totalorder %s119, %s133
      %p135 = scmp.eq.s32.totalorder %s20, 0
      %p136 = por %p134, %p135
      %s137 = ssub.s32 %s14, %s21
      %p138 = scmp.eq.s32.totalorder %s137, 0
      %s140 = sadd.s32 %s139, 1
      %s141 = scalar_select %p138, %s139, %s140
      %p144 = pneg %p138
      %p145 = scmp.eq.s32.totalorder %s14, 1
      %p146 = por %p144, %p145
      %p147 = scmp.ne.s32.totalorder %s139, %s142
      %p148 = scmp.eq.s32.totalorder %s14, 0
      %p149 = por %p147, %p148
      %p150 = scmp.ne.s32.totalorder %s139, %s142
      %p151 = scmp.eq.s32.totalorder %s19, 1
      %p152 = por %p150, %p151
      %p153 = scmp.ne.s32.totalorder %s142, %s143
      %p154 = scmp.eq.s32.totalorder %s19, 0
      %p155 = por %p153, %p154
      %p156 = scmp.ne.s32.totalorder %s142, %s143
      %p157 = scmp.eq.s32.totalorder %s20, 1
      %p158 = por %p156, %p157
      %p160 = scmp.ne.s32.totalorder %s143, %s159
      %p161 = scmp.eq.s32.totalorder %s20, 0
      %p162 = por %p160, %p161
      %p163 = scmp.le.s32.totalorder 1, %s14
      %p164 = scmp.lt.s32.totalorder %s14, 3
      %p165 = pnand %p163, %p164
      %p166 = pneg %p165
      // Predicated region
      $region9: #{tpu_custom_call.1} parent=5 // pred_check
        _
      $region10: #{tpu_custom_call.1} parent=5 // pred_check_branch
        %168 = sbr.rel (%p165) target = $region12
      $region11: #{tpu_custom_call.1} parent=5 // pred_region
        %s169 = ssub.s32 %s14, 1
        // Predicated region
        $region13: #{tpu_custom_call.1} parent=11 // pred_check
          %p170 = pneg %p87
        $region14: #{tpu_custom_call.1} parent=11 // pred_check_branch
          %172 = sbr.rel (%p170) target = $region16
        $region15: #{tpu_custom_call.1} parent=11 // pred_region
          _
        $region16: #{tpu_custom_call.1} parent=11 // pred_fallthru
          _
        // Predicated region
        $region17: #{tpu_custom_call.1} parent=11 // pred_check
          %p173 = pneg %p108
        $region18: #{tpu_custom_call.1} parent=11 // pred_check_branch
          %175 = sbr.rel (%p173) target = $region20
        $region19: #{tpu_custom_call.1} parent=11 // pred_region
          _
        $region20: #{tpu_custom_call.1} parent=11 // pred_fallthru
          _
        // Predicated region
        $region21: #{tpu_custom_call.1} parent=11 // pred_check
          %p176 = pneg %p129
        $region22: #{tpu_custom_call.1} parent=11 // pred_check_branch
          %178 = sbr.rel (%p176) target = $region24
        $region23: #{tpu_custom_call.1} parent=11 // pred_region
          _
        $region24: #{tpu_custom_call.1} parent=11 // pred_fallthru
          _
      $region12: #{tpu_custom_call.1} parent=5 // pred_fallthru
        _
      %p179 = scmp.lt.s32.totalorder %s14, 2
      // Predicated region
      $region25: #{tpu_custom_call.1} parent=5 // pred_check
        %p180 = pneg %p179
      $region26: #{tpu_custom_call.1} parent=5 // pred_check_branch
        %182 = sbr.rel (%p180) target = $region28
      $region27: #{tpu_custom_call.1} parent=5 // pred_region
        // Predicated region
        $region29: #{tpu_custom_call.1} parent=27 // pred_check
          %p183 = pneg %p34
        $region30: #{tpu_custom_call.1} parent=27 // pred_check_branch
          %185 = sbr.rel (%p183) target = $region32
        $region31: #{tpu_custom_call.1} parent=27 // pred_region
          %s186 = smul.u32 2, %s14
          %p187 = scmp.lt.s32.totalorder %s186, 3
          %s188 = scalar_select %p187, %s186, 3
          %s189 = smul.addr %s188, 8
          %s190 = scalar_lea.vmem %s0, %s189
          %s191 = smul.u32 2, %s14
        $region32: #{tpu_custom_call.1} parent=27 // pred_fallthru
          _
        // Predicated region
        $region33: #{tpu_custom_call.1} parent=27 // pred_check
          %p192 = pneg %p60
        $region34: #{tpu_custom_call.1} parent=27 // pred_check_branch
          %194 = sbr.rel (%p192) target = $region36
        $region35: #{tpu_custom_call.1} parent=27 // pred_region
          %s195 = smul.u32 2, %s14
          %p196 = scmp.lt.s32.totalorder %s195, 3
          %s197 = scalar_select %p196, %s195, 3
          %s198 = smul.addr %s197, 8
          %s199 = scalar_lea.vmem %s1, %s198
          %s200 = smul.u32 2, %s14
        $region36: #{tpu_custom_call.1} parent=27 // pred_fallthru
          _
      $region28: #{tpu_custom_call.1} parent=5 // pred_fallthru
        _
      %p201 = scmp.le.s32.totalorder 1, %s14
      %p202 = scmp.lt.s32.totalorder %s14, 3
      %p203 = pnand %p201, %p202
      %p204 = pneg %p203
      // Predicated region
      $region37: #{tpu_custom_call.1} parent=5 // pred_check
        _
      $region38: #{tpu_custom_call.1} parent=5 // pred_check_branch
        %206 = sbr.rel (%p203) target = $region40
      $region39: #{tpu_custom_call.1} parent=5 // pred_region
        %s207 = ssub.s32 %s14, 1
        %s208 = smul.u32 2, %s19
        %p209 = scmp.lt.s32.totalorder %s208, 3
        %s210 = scalar_select %p209, %s208, 3
        %s211 = smul.addr %s210, 8
        %s212 = scalar_lea.vmem %s0, %s211
        %p213 = pneg %p40
        %p214 = pneg %p37
        %s215 = smul.u32 2, %s19
        %p216 = scmp.lt.s32.totalorder %s215, 3
        %s217 = scalar_select %p216, %s215, 3
        %s218 = smul.addr %s217, 8
        %s219 = scalar_lea.vmem %s1, %s218
        %p220 = pneg %p66
        %p221 = pneg %p63
        %p222 = pneg %p87
        %p223 = pneg %p84
        %p224 = pneg %p108
        %p225 = pneg %p105
        %p226 = pneg %p129
        %p227 = pneg %p126
        %p228 = pneg %p155
        %p229 = pneg %p152
        %s230 = sand.u32 %s142, 1
        %s231 = scalar_lea.sflag [#allocation3], %s230
        %s232 = sand.u32 %s142, 1
        %s233 = smul.addr %s232, 16
        %s234 = scalar_lea.vmem [#allocation2], %s233
        %s235 = smul.u32 2, %s19
        %p236 = scmp.lt.s32.totalorder %s235, 3
        %s237 = scalar_select %p236, %s235, 3
        %s238 = smul.addr %s237, 8
        %s239 = scalar_lea.vmem %s0, %s238
        %s240 = smul.u32 2, %s19
        %s241 = smul.u32 2, %s19
        %p242 = scmp.lt.s32.totalorder %s241, 3
        %s243 = scalar_select %p242, %s241, 3
        %s244 = smul.addr %s243, 8
        %s245 = scalar_lea.vmem %s1, %s244
        %s246 = smul.u32 2, %s19
        %s247 = smul.u32 2, %s19
        %v249 = vld [vmem:[%s239] sm:$0xff]
        %v250 = vld [vmem:[%s239 + $0x8] sm:$0xff]
        %v251 = vld [vmem:[%s245] sm:$0xff]
        %v252 = vld [vmem:[%s245 + $0x8] sm:$0xff]
        %v253 = vld [vmem:[%s4] sm:$0x1]
        %v254 = vld [vmem:[%s4 + $0x1] sm:$0x1]
        %v255 = vld [vmem:[%s4 + $0x2] sm:$0x1]
        %v256 = vld [vmem:[%s4 + $0x3] sm:$0x1]
        %vm257 = vcmask 261120
        %v258 = vsel %vm257, %v249, 0.0
        %259 = vadd.xlane.f32.xlu0 %v258
        %v260 = vpop.xlane.xlu0 %259
        %v261 = vsel %vm257, %v250, 0.0
        %262 = vadd.xlane.f32.xlu0 %v261
        %v263 = vpop.xlane.xlu0 %262
        %v264 = vrcp.pop 32.0
        %v265 = vmul.f32 32.0, %v264
        %v266 = vsub.f32 1.0, %v265
        %v267 = vmul.f32 %v264, %v266
        %v268 = vadd.f32 %v264, %v267
        %vm269 = vweird.f32 %v264
        %v270 = vsel %vm269, %v264, %v268
        %v271 = vmul.f32 %v260, %v270
        %v272 = vmul.f32 %v263, %v270
        %v273 = vsub.f32 %v249, %v271
        %v274 = vsub.f32 %v250, %v272
        %v275 = vmul.f32 %v273, %v273
        %v276 = vmul.f32 %v274, %v274
        %v277 = vsel %vm257, %v275, 0.0
        %278 = vadd.xlane.f32.xlu0 %v277
        %v279 = vpop.xlane.xlu0 %278
        %v280 = vsel %vm257, %v276, 0.0
        %281 = vadd.xlane.f32.xlu0 %v280
        %v282 = vpop.xlane.xlu0 %281
        %v283 = vmul.f32 %v279, 0.032258064
        %v284 = vmul.f32 %v282, 0.032258064
        %v285 = vrsqrt.pop %v283
        %v286 = vmul.f32 %v285, %v283
        %v287 = vmul.f32 %v286, %v285
        %v288 = vmul.f32 0.5, %v287
        %v289 = vsub.f32 1.5, %v288
        %v290 = vmul.f32 %v285, %v289
        %v291 = vmul.f32 %v283, %v290
        %vm292 = vcmp.eq.f32.partialorder %v283, inf
        %v293 = vsel %vm292, %v283, %v291
        %vm294 = vcmp.eq.f32.partialorder %v283, 0.0
        %v295 = vand.u32 %v283, 2147483648
        %v296 = vsel %vm294, %v295, %v293
        %v297 = vrsqrt.pop %v284
        %v298 = vmul.f32 %v297, %v284
        %v299 = vmul.f32 %v298, %v297
        %v300 = vmul.f32 0.5, %v299
        %v301 = vsub.f32 1.5, %v300
        %v302 = vmul.f32 %v297, %v301
        %v303 = vmul.f32 %v284, %v302
        %vm304 = vcmp.eq.f32.partialorder %v284, inf
        %v305 = vsel %vm304, %v284, %v303
        %vm306 = vcmp.eq.f32.partialorder %v284, 0.0
        %v307 = vand.u32 %v284, 2147483648
        %v308 = vsel %vm306, %v307, %v305
        %v309 = vperm.slane %v253, 0
        %v310 = vmul.f32 %v309, %v273
        %v311 = vmul.f32 %v309, %v274
        %v312 = vadd.f32 %v296, 1e-06
        %v313 = vadd.f32 %v308, 1e-06
        %v314 = vrcp.pop %v312
        %v315 = vmul.f32 %v312, %v314
        %v316 = vsub.f32 1.0, %v315
        %v317 = vmul.f32 %v314, %v316
        %v318 = vadd.f32 %v314, %v317
        %vm319 = vweird.f32 %v312
        %vm320 = vweird.f32 %v314
        %vm321 = vmor %vm319, %vm320
        %v322 = vsel %vm321, %v314, %v318
        %v323 = vand.u32 2147483647, %v312
        %vm324 = vcmp.eq.f32.partialorder %v323, 8.507059e+37
        %v325 = vand.u32 %v312, 2147483648
        %v326 = vor.u32 1.1754944e-38, %v325
        %v327 = vsel %vm324, %v326, %v322
        %v328 = vmul.f32 %v310, %v327
        %v329 = vrcp.pop %v313
        %v330 = vmul.f32 %v313, %v329
        %v331 = vsub.f32 1.0, %v330
        %v332 = vmul.f32 %v329, %v331
        %v333 = vadd.f32 %v329, %v332
        %vm334 = vweird.f32 %v313
        %vm335 = vweird.f32 %v329
        %vm336 = vmor %vm334, %vm335
        %v337 = vsel %vm336, %v329, %v333
        %v338 = vand.u32 2147483647, %v313
        %vm339 = vcmp.eq.f32.partialorder %v338, 8.507059e+37
        %v340 = vand.u32 %v313, 2147483648
        %v341 = vor.u32 1.1754944e-38, %v340
        %v342 = vsel %vm339, %v341, %v337
        %v343 = vmul.f32 %v311, %v342
        %v344 = vperm.slane %v254, 0
        %v345 = vadd.f32 %v328, %v344
        %v346 = vadd.f32 %v343, %v344
        %v347 = vadd.f32 %v345, %v251
        %v348 = vadd.f32 %v346, %v252
        %v349 = vlaneseq
        %v350 = vshrl.u32 %v349, 7
        %v351 = vadd.s32 %v350, 8
        %vm352 = vcmp.lt.s32.totalorder %v350, 0
        %v353 = vsub.s32 0, %v350
        %v354 = vsel %vm352, %v353, %v350
        %v355 = vshrl.u32 %v354, 4
        %v356 = vand.u32 %v354, 15
        %v357 = vsub.s32 0, %v356
        %v358 = vsel %vm352, %v357, %v356
        %vm359 = vcmp.lt.s32.totalorder %v351, 0
        %v360 = vsub.s32 0, %v351
        %v361 = vsel %vm359, %v360, %v351
        %v362 = vshrl.u32 %v361, 4
        %v363 = vand.u32 %v361, 15
        %v364 = vsub.s32 0, %v363
        %v365 = vsel %vm359, %v364, %v363
        %vm366 = vcmp.ne.s32.totalorder %v358, 0
        %vm367 = vcmp.ne.s32.totalorder %v365, 0
        %vm368 = vcmp.lt.s32.totalorder %v358, 0
        %vm369 = vcmp.lt.s32.totalorder %v365, 0
        %vm370 = vmand %vm368, %vm366
        %vm371 = vmand %vm369, %vm367
        %v372 = vadd.s32 %v358, 16
        %v373 = vadd.s32 %v365, 16
        %v374 = vsel %vm370, %v372, %v358
        %v375 = vsel %vm371, %v373, %v365
        %vm376 = vcmp.eq.s32.totalorder %v374, 0
        %vm377 = vcmp.eq.s32.totalorder %v375, 0
        %v378 = vrot.slane %v347, 7
        %v379 = vrot.slane %v348, 7
        %vm380 = vcmp.lt.s32.totalorder %v350, 1
        %v381 = vsel %vm380, %v378, %v379
        %v382 = vsel %vm380, %v379, %v378
        %v383 = vsel %vm376, 1, 0
        %v384 = vsel %vm377, 1, 0
        %vm385 = vcmp.eq.s32.totalorder %v383, 1
        %vm386 = vcmp.eq.s32.totalorder %v384, 1
        %v387 = vsel %vm385, 0.0, %v382
        %v388 = vsel %vm386, 0.0, %v381
        %v389 = vpack.c.bf16 %v387, %v387
        %v390 = vpack.c.bf16 %v388, %v388
        %vm391 = vcmp.eq.s32.totalorder %v374, 15
        %vm392 = vcmp.eq.s32.totalorder %v375, 15
        %v393 = vrot.slane %v347, 1
        %v394 = vrot.slane %v348, 1
        %vm395 = vcmp.lt.s32.totalorder %v350, 7
        %v396 = vsel %vm395, %v393, %v394
        %v397 = vsel %vm395, %v394, %v393
        %v398 = vsel %vm391, 1, 0
        %v399 = vsel %vm392, 1, 0
        %vm400 = vcmp.eq.s32.totalorder %v398, 1
        %vm401 = vcmp.eq.s32.totalorder %v399, 1
        %v402 = vsel %vm400, 0.0, %v396
        %v403 = vsel %vm401, 0.0, %v397
        %v404 = vpack.c.bf16 %v402, %v402
        %v405 = vpack.c.bf16 %v403, %v403
        %v406 = vpack.c.bf16 %v347, %v347
        %v407 = vpack.c.bf16 %v348, %v348
        %v410 = vunpack.c.l.b16 %v389
        %v411 = vunpack.c.l.b16 %v390
        %v412 = vpack.c.b16 %v411, %v410
        %v415 = vunpack.c.l.b16 %v406
        %v416 = vunpack.c.l.b16 %v407
        %v417 = vpack.c.b16 %v416, %v415
        %418 = vrot.lane.b32.xlu0 %v417, 32
        %v419 = vpop.permute.xlu0 %418
        %v422 = vunpack.c.l.b16 %v404
        %v423 = vunpack.c.l.b16 %v405
        %v424 = vpack.c.b16 %v423, %v422
        %425 = vrot.lane.b32.xlu0 %v424, 64
        %v426 = vpop.permute.xlu0 %425
        %v429 = vsel %vm257, %v412, %v419
        %vm430 = vcmask 523264
        %v432 = vsel %vm430, %v429, %v426
        %v433 = vld [vmem:[%s2] sm:$0xf]
        %v434 = vld [vmem:[%s2 + $0x4] sm:$0xf]
        %v435 = vld [vmem:[%s2 + $0x8] sm:$0xf]
        %v436 = vld [vmem:[%s2 + $0xc] sm:$0xf]
        %v437 = vld [vmem:[%s2 + $0x10] sm:$0xf]
        %v438 = vld [vmem:[%s2 + $0x14] sm:$0xf]
        %v439 = vld [vmem:[%s2 + $0x18] sm:$0xf]
        %v440 = vld [vmem:[%s2 + $0x1c] sm:$0xf]
        %v441 = vld [vmem:[%s2 + $0x20] sm:$0xf]
        %v442 = vld [vmem:[%s2 + $0x24] sm:$0xf]
        %v443 = vld [vmem:[%s2 + $0x28] sm:$0xf]
        %v444 = vld [vmem:[%s2 + $0x2c] sm:$0xf]
        %v445 = vld [vmem:[%s3] sm:$0x1]
        %v447 = vperm.slane %v445, 0
        %v461 = vunpack.c.l.b16 %v433
        %v462 = vunpack.c.l.b16 %v434
        %v463 = vunpack.c.l.b16 %v435
        %v464 = vunpack.c.l.b16 %v436
        %v465 = vunpack.c.l.b16 %v437
        %v466 = vunpack.c.l.b16 %v438
        %v467 = vunpack.c.l.b16 %v439
        %v468 = vunpack.c.l.b16 %v440
        %v469 = vunpack.c.l.b16 %v441
        %v470 = vunpack.c.l.b16 %v442
        %v471 = vunpack.c.l.b16 %v443
        %v472 = vunpack.c.l.b16 %v444
        %v473 = vpack.c.b16 %v462, %v461
        %v474 = vpack.c.b16 %v464, %v463
        %v475 = vpack.c.b16 %v466, %v465
        %v476 = vpack.c.b16 %v468, %v467
        %v477 = vpack.c.b16 %v470, %v469
        %v478 = vpack.c.b16 %v472, %v471
        %vm485 = vcmask 785408
        %v486 = vsel %vm485, %v432, 0
        %488 = vmatpush.bf16.msra.mxu0 0
        %489 = vmatpush.bf16.msra.mxu0 0
        %490 = vmatpush.bf16.msra.mxu0 %v478
        %491 = vmatpush.bf16.msra.mxu0 %v477
        %492 = vmatpush.bf16.msra.mxu0 %v476
        %493 = vmatpush.bf16.msra.mxu0 %v475
        %494 = vmatpush.bf16.msra.mxu0 %v474
        %495 = vmatpush.bf16.msra.mxu0 %v473
        %496 = vmatmul.bf16.gmra.mxu0 %v486
        %v497 = vpop.f32.mrf.mxu0
        %v498 = vadd.f32 %v447, %v497
        %v499 = vpop.f32.mrf.mxu0
        %v500 = vadd.f32 %v447, %v499
        %501 = vdwg.mxu0
        %v502 = vmul.f32 %v498, 0.5
        %v503 = vmul.f32 %v500, 0.5
        %v504 = vtanh.pop %v502
        %v505 = vtanh.pop %v503
        %v506 = vmul.f32 %v504, 0.5
        %v507 = vmul.f32 %v505, 0.5
        %v508 = vadd.f32 %v506, 0.5
        %v509 = vadd.f32 %v507, 0.5
        %512 = vrot.lane.b32.xlu0 %v508, 96
        %v513 = vpop.permute.xlu0 %512
        %514 = vrot.lane.b32.xlu0 %v509, 96
        %v515 = vpop.permute.xlu0 %514
        %v518 = vmul.f32 %v498, %v513
        %v519 = vmul.f32 %v500, %v515
        %v520 = vadd.f32 %v249, %v518
        %v521 = vadd.f32 %v250, %v519
        %v522 = vsel %vm257, %v520, 0.0
        %523 = vadd.xlane.f32.xlu0 %v522
        %v524 = vpop.xlane.xlu0 %523
        %v525 = vsel %vm257, %v521, 0.0
        %526 = vadd.xlane.f32.xlu0 %v525
        %v527 = vpop.xlane.xlu0 %526
        %v528 = vmul.f32 %v524, %v270
        %v529 = vmul.f32 %v527, %v270
        %v530 = vsub.f32 %v520, %v528
        %v531 = vsub.f32 %v521, %v529
        %v532 = vmul.f32 %v530, %v530
        %v533 = vmul.f32 %v531, %v531
        %v534 = vsel %vm257, %v532, 0.0
        %535 = vadd.xlane.f32.xlu0 %v534
        %v536 = vpop.xlane.xlu0 %535
        %v537 = vsel %vm257, %v533, 0.0
        %538 = vadd.xlane.f32.xlu0 %v537
        %v539 = vpop.xlane.xlu0 %538
        %v540 = vmul.f32 %v536, 0.032258064
        %v541 = vmul.f32 %v539, 0.032258064
        %v542 = vrsqrt.pop %v540
        %v543 = vmul.f32 %v542, %v540
        %v544 = vmul.f32 %v543, %v542
        %v545 = vmul.f32 0.5, %v544
        %v546 = vsub.f32 1.5, %v545
        %v547 = vmul.f32 %v542, %v546
        %v548 = vmul.f32 %v540, %v547
        %vm549 = vcmp.eq.f32.partialorder %v540, inf
        %v550 = vsel %vm549, %v540, %v548
        %vm551 = vcmp.eq.f32.partialorder %v540, 0.0
        %v552 = vand.u32 %v540, 2147483648
        %v553 = vsel %vm551, %v552, %v550
        %v554 = vrsqrt.pop %v541
        %v555 = vmul.f32 %v554, %v541
        %v556 = vmul.f32 %v555, %v554
        %v557 = vmul.f32 0.5, %v556
        %v558 = vsub.f32 1.5, %v557
        %v559 = vmul.f32 %v554, %v558
        %v560 = vmul.f32 %v541, %v559
        %vm561 = vcmp.eq.f32.partialorder %v541, inf
        %v562 = vsel %vm561, %v541, %v560
        %vm563 = vcmp.eq.f32.partialorder %v541, 0.0
        %v564 = vand.u32 %v541, 2147483648
        %v565 = vsel %vm563, %v564, %v562
        %v566 = vperm.slane %v255, 0
        %v567 = vmul.f32 %v566, %v530
        %v568 = vmul.f32 %v566, %v531
        %v569 = vadd.f32 %v553, 1e-06
        %v570 = vadd.f32 %v565, 1e-06
        %v571 = vrcp.pop %v569
        %v572 = vmul.f32 %v569, %v571
        %v573 = vsub.f32 1.0, %v572
        %v574 = vmul.f32 %v571, %v573
        %v575 = vadd.f32 %v571, %v574
        %vm576 = vweird.f32 %v569
        %vm577 = vweird.f32 %v571
        %vm578 = vmor %vm576, %vm577
        %v579 = vsel %vm578, %v571, %v575
        %v580 = vand.u32 2147483647, %v569
        %vm581 = vcmp.eq.f32.partialorder %v580, 8.507059e+37
        %v582 = vand.u32 %v569, 2147483648
        %v583 = vor.u32 1.1754944e-38, %v582
        %v584 = vsel %vm581, %v583, %v579
        %v585 = vmul.f32 %v567, %v584
        %v586 = vrcp.pop %v570
        %v587 = vmul.f32 %v570, %v586
        %v588 = vsub.f32 1.0, %v587
        %v589 = vmul.f32 %v586, %v588
        %v590 = vadd.f32 %v586, %v589
        %vm591 = vweird.f32 %v570
        %vm592 = vweird.f32 %v586
        %vm593 = vmor %vm591, %vm592
        %v594 = vsel %vm593, %v586, %v590
        %v595 = vand.u32 2147483647, %v570
        %vm596 = vcmp.eq.f32.partialorder %v595, 8.507059e+37
        %v597 = vand.u32 %v570, 2147483648
        %v598 = vor.u32 1.1754944e-38, %v597
        %v599 = vsel %vm596, %v598, %v594
        %v600 = vmul.f32 %v568, %v599
        %v601 = vperm.slane %v256, 0
        %v602 = vadd.f32 %v585, %v601
        %v603 = vadd.f32 %v600, %v601
        %604 = vst.msk [vmem:[%s234] sm:$0xff] %vm257, %v602
        %605 = vst.msk [vmem:[%s234 + $0x8] sm:$0xff] %vm257, %v603
        %s606 = sand.u32 %s142, 1
        %s607 = scalar_lea.sflag [#allocation3], %s606
        %s608 = sand.u32 %s142, 1
        %s609 = smul.addr %s608, 16
        %s610 = scalar_lea.vmem [#allocation2], %s609
        // Predicated region
        $region41: #{tpu_custom_call.1} parent=39 // pred_check
          %p611 = pneg %p152
        $region42: #{tpu_custom_call.1} parent=39 // pred_check_branch
          %613 = sbr.rel (%p611) target = $region44
        $region43: #{tpu_custom_call.1} parent=39 // pred_region
          %s614 = smul.u32 2, %s19
          %616 = vsyncadd %s607, 0
          %s617 = smul.addr %s614, 8
          %s618 = scalar_lea.hbm %s5, %s617
          %s619 = sshll.u32 %s610, 4
          %s620 = int_to_ptr.vmem [resolvable:$true] %s619
          %s621 = sshll.u32 %s618, 4
          %s622 = int_to_ptr.hbm [resolvable:$true] %s621
          %627 = dma.vmem_to_hbm [thread:$0]  %s620, 256, %s622, %s607, 128, 128, 8
        $region44: #{tpu_custom_call.1} parent=39 // pred_fallthru
          _
      $region40: #{tpu_custom_call.1} parent=5 // pred_fallthru
        _
      %p628 = scmp.le.s32.totalorder 2, %s14
      // Predicated region
      $region45: #{tpu_custom_call.1} parent=5 // pred_check
        %p629 = pneg %p628
      $region46: #{tpu_custom_call.1} parent=5 // pred_check_branch
        %631 = sbr.rel (%p629) target = $region48
      $region47: #{tpu_custom_call.1} parent=5 // pred_region
        %s632 = ssub.s32 %s14, 2
        // Predicated region
        $region49: #{tpu_custom_call.1} parent=47 // pred_check
          %p633 = pneg %p158
        $region50: #{tpu_custom_call.1} parent=47 // pred_check_branch
          %635 = sbr.rel (%p633) target = $region52
        $region51: #{tpu_custom_call.1} parent=47 // pred_region
          %s636 = sand.u32 %s143, 1
          %s637 = scalar_lea.sflag [#allocation3], %s636
          %s638 = sand.u32 %s143, 1
          %s639 = smul.addr %s638, 16
          %s640 = scalar_lea.vmem [#allocation2], %s639
          %642 = dma.done %s637, 256
        $region52: #{tpu_custom_call.1} parent=47 // pred_fallthru
          _
      $region48: #{tpu_custom_call.1} parent=5 // pred_fallthru
        _
    $region6: #{tpu_custom_call.1} parent=1 // loop_footer
      %s18 = sadd.s32 1, %s14
    $region7: #{tpu_custom_call.1} parent=1 // loop_footer_branch
      %13 = sbr.rel target = $region3
    $region8: #{tpu_custom_call.1} parent=1 // loop_exit
      _
    %643 = vsyncpa [#allocation3], 1
    %s644 = scalar_lea.sflag [#allocation3], 1
    %645 = vsyncpa %s644, 1

</llo_original>
